<compile_context>
chip_gen: v5e
topology: v5e:2x2
jax: 0.10.0
libtpu: 0.0.40
codegen_flags: <defaults>
</compile_context>

<pallas_src>
import functools

import numpy as np
import jax
import jax.numpy as jnp
from jax import lax
from jax.experimental import pallas as pl
from jax.experimental.pallas import tpu as pltpu

_LANE = 128
_SUB = 8

_PI = np.float32(np.pi)
_HALF_PI = np.float32(np.pi / 2.0)
_TWO_PI = np.float32(2.0 * np.pi)

# Odd minimax polynomial for atan(t), t in [0, 1]  (max abs error ~2e-6 rad).
_C0 = np.float32(0.99997726)
_C1 = np.float32(-0.33262347)
_C2 = np.float32(0.19354346)
_C3 = np.float32(-0.11643287)
_C4 = np.float32(0.05265332)
_C5 = np.float32(-0.01172120)


def _atan2(y, x):
    """Branchless float32 atan2: EUP approx reciprocal + 1 NR step + minimax poly."""
    ax = jnp.abs(x)
    ay = jnp.abs(y)
    mx = jnp.maximum(ax, ay)
    mn = jnp.minimum(ax, ay)
    den = jnp.maximum(mx, np.float32(1e-30))      # guards 0/0 -> 0
    r = pl.reciprocal(den, approx=True)           # EUP slot (idle in this kernel)
    r = r * (np.float32(2.0) - den * r)           # one Newton-Raphson refinement
    t = mn * r
    s = t * t
    p = ((((_C5 * s + _C4) * s + _C3) * s + _C2) * s + _C1) * s + _C0
    a = p * t                                     # atan(t), t in [0, 1]
    a = jnp.where(ay > ax, _HALF_PI - a, a)       # octant fix
    a = jnp.where(x < np.float32(0.0), _PI - a, a)  # quadrant fix
    return jnp.where(y < np.float32(0.0), -a, a)    # sign of y


def _anti_wrap_pair(delta):
    """anti_wrap(delta) for delta = difference of two wrapped angles, |delta| < 2*pi."""
    a = jnp.abs(delta)
    return jnp.minimum(a, _TWO_PI - a)


def _wrapped_phase_loss_kernel(t_re_ref, t_im_ref, p_re_ref, p_im_ref,
                               out_ref, carry_ref, *, F_valid, T, t_tile):
    F_pad = t_re_ref.shape[0]
    t_idx = pl.program_id(1)
    zero = np.float32(0.0)

    # Epsilon-shifted operands (reference semantics) and the Hermitian product
    # t * conj(p); its angle equals wrap(tp - pp), which is all the loss needs.
    tr = t_re_ref[...] + np.float32(1e-05)
    ti = t_im_ref[...] + np.float32(1e-10)
    pr = p_re_ref[...] + np.float32(1e-05)
    pi = p_im_ref[...] + np.float32(1e-10)
    d = _atan2(ti * pr - tr * pi, tr * pr + ti * pi)   # (F_pad, t_tile), in (-pi, pi]

    col = lax.broadcasted_iota(jnp.int32, (1, t_tile), 1)
    row = lax.broadcasted_iota(jnp.int32, (F_pad, 1), 0)
    vc = jnp.minimum(T - t_idx * t_tile, t_tile)        # valid columns in this tile

    # Zero d at padded rows / ragged columns (only when statically necessary);
    # zeroed entries then contribute exactly 0 to every sum below.
    needs_col_mask = (T % t_tile) != 0
    needs_row_mask = F_pad != F_valid
    if needs_col_mask and needs_row_mask:
        d = jnp.where(jnp.logical_and(col < vc, row < F_valid), d, zero)
    elif needs_col_mask:
        d = jnp.where(col < vc, d, zero)
    elif needs_row_mask:
        d = jnp.where(row < F_valid, d, zero)

    # ---- instantaneous-phase term: anti_wrap(d) == |d| for wrapped d ---------
    ip_sum = jnp.sum(jnp.abs(d))

    # ---- group-delay term: adjacent rows via an XLU sublane roll -------------
    d_f = pltpu.roll(d, shift=F_pad - 1, axis=0)         # d_f[i] = d[i+1 mod F_pad]
    gd_vals = _anti_wrap_pair(d_f - d)
    gd_sum = jnp.sum(jnp.where(row < (F_valid - 1), gd_vals, zero))

    # ---- instantaneous-frequency term: adjacent columns via an XLU lane roll -
    d_t = pltpu.roll(d, shift=t_tile - 1, axis=1)        # d_t[:, j] = d[:, j+1 mod]
    iaf_vals = _anti_wrap_pair(d_t - d)
    iaf_sum = jnp.sum(jnp.where(col < (vc - 1), iaf_vals, zero))

    # Cross-tile boundary column: first column of this tile vs last column of the
    # previous tile (VMEM carry).  On the first tile the carry is seeded with the
    # first column itself so the boundary term is exactly zero (never stale VMEM).
    first_col = d[:, 0:1]

    @pl.when(t_idx == 0)
    def _():
        carry_ref[...] = first_col

    iaf_sum = iaf_sum + jnp.sum(_anti_wrap_pair(first_col - carry_ref[...]))
    carry_ref[...] = d[:, t_tile - 1:t_tile]

    # ---- accumulate the 3 per-batch partial sums into a single lane row ------
    lane = lax.broadcasted_iota(jnp.int32, (1, _LANE), 1)
    vec = jnp.where(lane == 0, ip_sum, zero)
    vec = jnp.where(lane == 1, gd_sum, vec)
    vec = jnp.where(lane == 2, iaf_sum, vec)

    @pl.when(t_idx == 0)
    def _():
        out_ref[...] = jnp.zeros_like(out_ref)

    out_ref[...] += vec


def _pick_t_tile(F_pad, T):
    """Lane-aligned time tile: ~1 MiB per input block so 4 inputs x 2 pipeline
    buffers plus Mosaic temporaries stay well inside the default scoped VMEM on
    every TPU generation (v5e 16 MiB scoped, v7x 64 MiB physical)."""
    t_pad = -(-T // _LANE) * _LANE
    per_input_budget = 1 << 20
    cap = (per_input_budget // (4 * F_pad)) // _LANE * _LANE
    cap = max(_LANE, min(1024, cap))
    return min(t_pad, cap)


@functools.partial(jax.jit, static_argnames=("t_tile",))
def wrapped_phase_loss(target_cplx, predicted_cplx, t_tile=None):
    """Pallas-backed equivalent of WrappedPhaseLoss.forward (returns a scalar)."""
    # TODO(synk): the complex -> planar real/imag split below is a separate XLA
    # copy pass over HBM; fusing it with the spectrogram producer (or feeding
    # planar arrays directly) removes ~1/3 of end-to-end HBM traffic, which
    # matters most on bandwidth-bound v5e.
    t_re = jnp.real(target_cplx).astype(jnp.float32)
    t_im = jnp.imag(target_cplx).astype(jnp.float32)
    p_re = jnp.real(predicted_cplx).astype(jnp.float32)
    p_im = jnp.imag(predicted_cplx).astype(jnp.float32)

    B, F, T = t_re.shape

    # Pad F to a multiple of 8 so the XLU sublane-roll gd path is always taken
    # (padded rows are masked out inside the kernel).
    F_pad = -(-F // _SUB) * _SUB
    if F_pad != F:
        pad = ((0, 0), (0, F_pad - F), (0, 0))
        t_re = jnp.pad(t_re, pad)
        t_im = jnp.pad(t_im, pad)
        p_re = jnp.pad(p_re, pad)
        p_im = jnp.pad(p_im, pad)

    if t_tile is None:
        t_tile = _pick_t_tile(F_pad, T)
    t_tile = max(_LANE, min(-(-int(t_tile) // _LANE) * _LANE, -(-T // _LANE) * _LANE))
    n_t = pl.cdiv(T, t_tile)

    kernel = functools.partial(_wrapped_phase_loss_kernel,
                               F_valid=F, T=T, t_tile=t_tile)

    partials = pl.pallas_call(
        kernel,
        out_shape=jax.ShapeDtypeStruct((B, 1, _LANE), jnp.float32),
        grid_spec=pltpu.PrefetchScalarGridSpec(
            num_scalar_prefetch=0,
            grid=(B, n_t),
            in_specs=[pl.BlockSpec((None, F_pad, t_tile), lambda b, t: (b, 0, t))
                      for _ in range(4)],
            out_specs=pl.BlockSpec((None, 1, _LANE), lambda b, t: (b, 0, 0)),
            scratch_shapes=[pltpu.VMEM((F_pad, 1), jnp.float32)],
        ),
        compiler_params=pltpu.CompilerParams(
            dimension_semantics=("parallel", "arbitrary")),
    )(t_re, t_im, p_re, p_im)

    ip_total = jnp.sum(partials[:, 0, 0])
    gd_total = jnp.sum(partials[:, 0, 1])
    iaf_total = jnp.sum(partials[:, 0, 2])

    ip_loss = ip_total / np.float32(B * F * T)
    gd_loss = gd_total / np.float32(B * (F - 1) * T)
    iaf_loss = iaf_total / np.float32(B * F * (T - 1))
    return ip_loss + gd_loss + iaf_loss


# ---------------------------------------------------------------------------
# Pure-JAX reference (uses XLA's arctan2) for a sanity check.
# ---------------------------------------------------------------------------
def wrapped_phase_loss_ref(target_cplx, predicted_cplx):
    tp = jnp.arctan2(jnp.imag(target_cplx) + 1e-10, jnp.real(target_cplx) + 1e-05)
    pp = jnp.arctan2(jnp.imag(predicted_cplx) + 1e-10, jnp.real(predicted_cplx) + 1e-05)
    aw = lambda x: jnp.abs(x - jnp.round(x / (2 * np.pi)) * (2 * np.pi))
    ip = jnp.mean(aw(tp - pp))
    gd = jnp.mean(aw(jnp.diff(tp, axis=1) - jnp.diff(pp, axis=1)))
    iaf = jnp.mean(aw(jnp.diff(tp, axis=2) - jnp.diff(pp, axis=2)))
    return ip + gd + iaf


def _make_pair(key, B, F, T):
    k1, k2, k3, k4 = jax.random.split(key, 4)
    tgt = (jax.random.normal(k1, (B, F, T), jnp.float32)
           + 1j * jax.random.normal(k2, (B, F, T), jnp.float32)).astype(jnp.complex64)
    prd = (jax.random.normal(k3, (B, F, T), jnp.float32)
           + 1j * jax.random.normal(k4, (B, F, T), jnp.float32)).astype(jnp.complex64)
    return tgt, prd


if __name__ == "__main__":
    key = jax.random.PRNGKey(0)
    k_main, k_pad, k_fast = jax.random.split(key, 3)

    # Main case: small spectrogram, single auto-sized time tile (ragged lanes).
    tgt, prd = _make_pair(k_main, 2, 16, 320)
    ref = float(wrapped_phase_loss_ref(tgt, prd))
    loss_single = jax.block_until_ready(wrapped_phase_loss(tgt, prd))
    assert np.isfinite(float(loss_single))
    np.testing.assert_allclose(float(loss_single), ref, rtol=2e-3, atol=2e-3)

    # Multi-tile path: 128-wide tiles, ragged last tile, carried boundary column.
    loss_tiled = jax.block_until_ready(wrapped_phase_loss(tgt, prd, t_tile=128))
    np.testing.assert_allclose(float(loss_tiled), ref, rtol=2e-3, atol=2e-3)

    # Sublane-unaligned F (padded to 16 in the wrapper) + T multiple of 128.
    tgt_p, prd_p = _make_pair(k_pad, 1, 10, 256)
    ref_p = float(wrapped_phase_loss_ref(tgt_p, prd_p))
    loss_p = jax.block_until_ready(wrapped_phase_loss(tgt_p, prd_p, t_tile=128))
    np.testing.assert_allclose(float(loss_p), ref_p, rtol=2e-3, atol=2e-3)

    # Fully aligned fast path: no row or column masking at all.
    tgt_f, prd_f = _make_pair(k_fast, 2, 8, 256)
    ref_f = float(wrapped_phase_loss_ref(tgt_f, prd_f))
    loss_f = jax.block_until_ready(wrapped_phase_loss(tgt_f, prd_f, t_tile=128))
    np.testing.assert_allclose(float(loss_f), ref_f, rtol=2e-3, atol=2e-3)

    print("KERNEL_OK")
</pallas_src>

<mosaic_0001>
module attributes {stable_mosaic.version = 11 : i64} {
  func.func @_wrapped_phase_loss_kernel(%arg0: i32, %arg1: i32, %arg2: memref<1x16x384xf32, #tpu.memory_space<vmem>>, %arg3: memref<1x16x384xf32, #tpu.memory_space<vmem>>, %arg4: memref<1x16x384xf32, #tpu.memory_space<vmem>>, %arg5: memref<1x16x384xf32, #tpu.memory_space<vmem>>, %arg6: memref<1x1x128xf32, #tpu.memory_space<vmem>>, %arg7: memref<16x1xf32, #tpu.memory_space<vmem>>) attributes {dimension_semantics = [#tpu.dimension_semantics<parallel>, #tpu.dimension_semantics<arbitrary>], iteration_bounds = array<i64: 2, 1>, scalar_prefetch = 0 : i64, scratch_operands = 1 : i64, tpu.core_type = #tpu.core_type<tc>, window_params = [{transform_indices = @transform_0, window_bounds = array<i64: 1, 16, 384>}, {transform_indices = @transform_1, window_bounds = array<i64: 1, 16, 384>}, {transform_indices = @transform_2, window_bounds = array<i64: 1, 16, 384>}, {transform_indices = @transform_3, window_bounds = array<i64: 1, 16, 384>}, {transform_indices = @transform_4, window_bounds = array<i64: 1, 1, 128>}]} {
    %c0 = arith.constant 0 : index
    %c0_0 = arith.constant 0 : index
    %c0_1 = arith.constant 0 : index
    %0 = vector.load %arg2[%c0, %c0_0, %c0_1] : memref<1x16x384xf32, #tpu.memory_space<vmem>>, vector<1x16x384xf32>
    %1 = vector.shape_cast %0 : vector<1x16x384xf32> to vector<16x384xf32>
    %cst = arith.constant 9.99999974E-6 : f32
    %2 = vector.broadcast %cst : f32 to vector<16x384xf32>
    %3 = arith.addf %1, %2 : vector<16x384xf32>
    %c0_2 = arith.constant 0 : index
    %c0_3 = arith.constant 0 : index
    %c0_4 = arith.constant 0 : index
    %4 = vector.load %arg3[%c0_2, %c0_3, %c0_4] : memref<1x16x384xf32, #tpu.memory_space<vmem>>, vector<1x16x384xf32>
    %5 = vector.shape_cast %4 : vector<1x16x384xf32> to vector<16x384xf32>
    %cst_5 = arith.constant 1.000000e-10 : f32
    %6 = vector.broadcast %cst_5 : f32 to vector<16x384xf32>
    %7 = arith.addf %5, %6 : vector<16x384xf32>
    %c0_6 = arith.constant 0 : index
    %c0_7 = arith.constant 0 : index
    %c0_8 = arith.constant 0 : index
    %8 = vector.load %arg4[%c0_6, %c0_7, %c0_8] : memref<1x16x384xf32, #tpu.memory_space<vmem>>, vector<1x16x384xf32>
    %9 = vector.shape_cast %8 : vector<1x16x384xf32> to vector<16x384xf32>
    %cst_9 = arith.constant 9.99999974E-6 : f32
    %10 = vector.broadcast %cst_9 : f32 to vector<16x384xf32>
    %11 = arith.addf %9, %10 : vector<16x384xf32>
    %c0_10 = arith.constant 0 : index
    %c0_11 = arith.constant 0 : index
    %c0_12 = arith.constant 0 : index
    %12 = vector.load %arg5[%c0_10, %c0_11, %c0_12] : memref<1x16x384xf32, #tpu.memory_space<vmem>>, vector<1x16x384xf32>
    %13 = vector.shape_cast %12 : vector<1x16x384xf32> to vector<16x384xf32>
    %cst_13 = arith.constant 1.000000e-10 : f32
    %14 = vector.broadcast %cst_13 : f32 to vector<16x384xf32>
    %15 = arith.addf %13, %14 : vector<16x384xf32>
    %16 = arith.mulf %7, %11 : vector<16x384xf32>
    %17 = arith.mulf %3, %15 : vector<16x384xf32>
    %18 = arith.subf %16, %17 : vector<16x384xf32>
    %19 = arith.mulf %3, %11 : vector<16x384xf32>
    %20 = arith.mulf %7, %15 : vector<16x384xf32>
    %21 = arith.addf %19, %20 : vector<16x384xf32>
    %22 = math.absf %21 : vector<16x384xf32>
    %23 = math.absf %18 : vector<16x384xf32>
    %24 = arith.maximumf %22, %23 : vector<16x384xf32>
    %25 = arith.minimumf %22, %23 : vector<16x384xf32>
    %cst_14 = arith.constant 1.000000e-30 : f32
    %26 = vector.broadcast %cst_14 : f32 to vector<16x384xf32>
    %27 = arith.maximumf %24, %26 : vector<16x384xf32>
    %28 = tpu.reciprocal %27 {approx = true} : vector<16x384xf32> -> vector<16x384xf32>
    %29 = arith.mulf %27, %28 : vector<16x384xf32>
    %cst_15 = arith.constant 2.000000e+00 : f32
    %30 = vector.broadcast %cst_15 : f32 to vector<16x384xf32>
    %31 = arith.subf %30, %29 : vector<16x384xf32>
    %32 = arith.mulf %28, %31 : vector<16x384xf32>
    %33 = arith.mulf %25, %32 : vector<16x384xf32>
    %34 = arith.mulf %33, %33 : vector<16x384xf32>
    %cst_16 = arith.constant -1.172120e-02 : f32
    %35 = vector.broadcast %cst_16 : f32 to vector<16x384xf32>
    %36 = arith.mulf %35, %34 : vector<16x384xf32>
    %cst_17 = arith.constant 0.0526533201 : f32
    %37 = vector.broadcast %cst_17 : f32 to vector<16x384xf32>
    %38 = arith.addf %36, %37 : vector<16x384xf32>
    %39 = arith.mulf %38, %34 : vector<16x384xf32>
    %cst_18 = arith.constant -0.116432868 : f32
    %40 = vector.broadcast %cst_18 : f32 to vector<16x384xf32>
    %41 = arith.addf %39, %40 : vector<16x384xf32>
    %42 = arith.mulf %41, %34 : vector<16x384xf32>
    %cst_19 = arith.constant 0.193543464 : f32
    %43 = vector.broadcast %cst_19 : f32 to vector<16x384xf32>
    %44 = arith.addf %42, %43 : vector<16x384xf32>
    %45 = arith.mulf %44, %34 : vector<16x384xf32>
    %cst_20 = arith.constant -0.332623482 : f32
    %46 = vector.broadcast %cst_20 : f32 to vector<16x384xf32>
    %47 = arith.addf %45, %46 : vector<16x384xf32>
    %48 = arith.mulf %47, %34 : vector<16x384xf32>
    %cst_21 = arith.constant 0.999977231 : f32
    %49 = vector.broadcast %cst_21 : f32 to vector<16x384xf32>
    %50 = arith.addf %48, %49 : vector<16x384xf32>
    %51 = arith.mulf %50, %33 : vector<16x384xf32>
    %52 = arith.cmpf ogt, %23, %22 : vector<16x384xf32>
    %cst_22 = arith.constant 1.57079637 : f32
    %53 = vector.broadcast %cst_22 : f32 to vector<16x384xf32>
    %54 = arith.subf %53, %51 : vector<16x384xf32>
    %55 = arith.select %52, %54, %51 : vector<16x384xi1>, vector<16x384xf32>
    %cst_23 = arith.constant 0.000000e+00 : f32
    %56 = vector.broadcast %cst_23 : f32 to vector<16x384xf32>
    %57 = arith.cmpf olt, %21, %56 : vector<16x384xf32>
    %cst_24 = arith.constant 3.14159274 : f32
    %58 = vector.broadcast %cst_24 : f32 to vector<16x384xf32>
    %59 = arith.subf %58, %55 : vector<16x384xf32>
    %60 = arith.select %57, %59, %55 : vector<16x384xi1>, vector<16x384xf32>
    %cst_25 = arith.constant 0.000000e+00 : f32
    %61 = vector.broadcast %cst_25 : f32 to vector<16x384xf32>
    %62 = arith.cmpf olt, %18, %61 : vector<16x384xf32>
    %cst_26 = arith.constant 0.000000e+00 : f32
    %63 = vector.broadcast %cst_26 : f32 to vector<16x384xf32>
    %64 = arith.subf %63, %60 : vector<16x384xf32>
    %65 = arith.select %62, %64, %60 : vector<16x384xi1>, vector<16x384xf32>
    %66 = tpu.iota {dimensions = array<i32: 1>} : vector<1x384xi32>
    %67 = tpu.iota {dimensions = array<i32: 0>} : vector<16x1xi32>
    %c384_i32 = arith.constant 384 : i32
    %68 = arith.muli %arg1, %c384_i32 : i32
    %c320_i32 = arith.constant 320 : i32
    %69 = arith.subi %c320_i32, %68 : i32
    %c384_i32_27 = arith.constant 384 : i32
    %70 = arith.minsi %69, %c384_i32_27 : i32
    %71 = vector.broadcast %70 : i32 to vector<1x384xi32>
    %72 = arith.cmpi slt, %66, %71 : vector<1x384xi32>
    %cst_28 = arith.constant 0.000000e+00 : f32
    %73 = vector.shape_cast %72 : vector<1x384xi1> to vector<1x384xi1>
    %74 = vector.broadcast %73 : vector<1x384xi1> to vector<16x384xi1>
    %75 = vector.broadcast %cst_28 : f32 to vector<16x384xf32>
    %76 = arith.select %74, %65, %75 : vector<16x384xi1>, vector<16x384xf32>
    %77 = math.absf %76 : vector<16x384xf32>
    %78 = vector.shape_cast %77 : vector<16x384xf32> to vector<1x16x384xf32>
    %cst_29 = arith.constant dense<0.000000e+00> : vector<1xf32>
    %79 = vector.multi_reduction <add>, %78, %cst_29 [1, 2] : vector<1x16x384xf32> to vector<1xf32>
    %80 = vector.shape_cast %79 : vector<1xf32> to vector<1x1x1xf32>
    %81 = vector.extract %80[0, 0, 0] : f32 from vector<1x1x1xf32>
    %c15_i32 = arith.constant 15 : i32
    %82 = tpu.dynamic_rotate %76 by %c15_i32 dim 0 : vector<16x384xf32>, i32 -> vector<16x384xf32>
    %83 = arith.subf %82, %76 : vector<16x384xf32>
    %84 = math.absf %83 : vector<16x384xf32>
    %cst_30 = arith.constant 6.28318548 : f32
    %85 = vector.broadcast %cst_30 : f32 to vector<16x384xf32>
    %86 = arith.subf %85, %84 : vector<16x384xf32>
    %87 = arith.minimumf %84, %86 : vector<16x384xf32>
    %c15_i32_31 = arith.constant 15 : i32
    %88 = vector.broadcast %c15_i32_31 : i32 to vector<16x1xi32>
    %89 = arith.cmpi slt, %67, %88 : vector<16x1xi32>
    %cst_32 = arith.constant 0.000000e+00 : f32
    %90 = vector.shape_cast %89 : vector<16x1xi1> to vector<16x1xi1>
    %91 = vector.broadcast %90 : vector<16x1xi1> to vector<16x384xi1>
    %92 = vector.broadcast %cst_32 : f32 to vector<16x384xf32>
    %93 = arith.select %91, %87, %92 : vector<16x384xi1>, vector<16x384xf32>
    %94 = vector.shape_cast %93 : vector<16x384xf32> to vector<1x16x384xf32>
    %cst_33 = arith.constant dense<0.000000e+00> : vector<1xf32>
    %95 = vector.multi_reduction <add>, %94, %cst_33 [1, 2] : vector<1x16x384xf32> to vector<1xf32>
    %96 = vector.shape_cast %95 : vector<1xf32> to vector<1x1x1xf32>
    %97 = vector.extract %96[0, 0, 0] : f32 from vector<1x1x1xf32>
    %c383_i32 = arith.constant 383 : i32
    %98 = tpu.dynamic_rotate %76 by %c383_i32 dim 1 : vector<16x384xf32>, i32 -> vector<16x384xf32>
    %99 = arith.subf %98, %76 : vector<16x384xf32>
    %100 = math.absf %99 : vector<16x384xf32>
    %cst_34 = arith.constant 6.28318548 : f32
    %101 = vector.broadcast %cst_34 : f32 to vector<16x384xf32>
    %102 = arith.subf %101, %100 : vector<16x384xf32>
    %103 = arith.minimumf %100, %102 : vector<16x384xf32>
    %c1_i32 = arith.constant 1 : i32
    %104 = arith.subi %70, %c1_i32 : i32
    %105 = vector.broadcast %104 : i32 to vector<1x384xi32>
    %106 = arith.cmpi slt, %66, %105 : vector<1x384xi32>
    %cst_35 = arith.constant 0.000000e+00 : f32
    %107 = vector.shape_cast %106 : vector<1x384xi1> to vector<1x384xi1>
    %108 = vector.broadcast %107 : vector<1x384xi1> to vector<16x384xi1>
    %109 = vector.broadcast %cst_35 : f32 to vector<16x384xf32>
    %110 = arith.select %108, %103, %109 : vector<16x384xi1>, vector<16x384xf32>
    %111 = vector.shape_cast %110 : vector<16x384xf32> to vector<1x16x384xf32>
    %cst_36 = arith.constant dense<0.000000e+00> : vector<1xf32>
    %112 = vector.multi_reduction <add>, %111, %cst_36 [1, 2] : vector<1x16x384xf32> to vector<1xf32>
    %113 = vector.shape_cast %112 : vector<1xf32> to vector<1x1x1xf32>
    %114 = vector.extract %113[0, 0, 0] : f32 from vector<1x1x1xf32>
    %115 = vector.extract_strided_slice %76 {offsets = [0, 0], sizes = [16, 1], strides = [1, 1]} : vector<16x384xf32> to vector<16x1xf32>
    %c0_i32 = arith.constant 0 : i32
    %116 = arith.cmpi eq, %arg1, %c0_i32 : i32
    %117 = arith.extui %116 : i1 to i32
    %c0_i32_37 = arith.constant 0 : i32
    %118 = arith.cmpi ne, %117, %c0_i32_37 : i32
    scf.if %118 {
      %c0_55 = arith.constant 0 : index
      %c0_56 = arith.constant 0 : index
      %155 = vector.load %arg7[%c0_55, %c0_56] : memref<16x1xf32, #tpu.memory_space<vmem>>, vector<16x1xf32>
      tpu.vector_store %arg7[%c0_55, %c0_56], %115 {strides = array<i32>} : memref<16x1xf32, #tpu.memory_space<vmem>>, vector<16x1xf32>,
    } else {
    }
    %c0_38 = arith.constant 0 : index
    %c0_39 = arith.constant 0 : index
    %119 = vector.load %arg7[%c0_38, %c0_39] : memref<16x1xf32, #tpu.memory_space<vmem>>, vector<16x1xf32>
    %120 = arith.subf %115, %119 : vector<16x1xf32>
    %121 = math.absf %120 : vector<16x1xf32>
    %cst_40 = arith.constant 6.28318548 : f32
    %122 = vector.broadcast %cst_40 : f32 to vector<16x1xf32>
    %123 = arith.subf %122, %121 : vector<16x1xf32>
    %124 = arith.minimumf %121, %123 : vector<16x1xf32>
    %125 = vector.shape_cast %124 : vector<16x1xf32> to vector<1x16x1xf32>
    %cst_41 = arith.constant dense<0.000000e+00> : vector<1xf32>
    %126 = vector.multi_reduction <add>, %125, %cst_41 [1, 2] : vector<1x16x1xf32> to vector<1xf32>
    %127 = vector.shape_cast %126 : vector<1xf32> to vector<1x1x1xf32>
    %128 = vector.extract %127[0, 0, 0] : f32 from vector<1x1x1xf32>
    %129 = arith.addf %114, %128 : f32
    %130 = vector.extract_strided_slice %76 {offsets = [0, 383], sizes = [16, 1], strides = [1, 1]} : vector<16x384xf32> to vector<16x1xf32>
    %c0_42 = arith.constant 0 : index
    %c0_43 = arith.constant 0 : index
    %131 = vector.load %arg7[%c0_42, %c0_43] : memref<16x1xf32, #tpu.memory_space<vmem>>, vector<16x1xf32>
    tpu.vector_store %arg7[%c0_42, %c0_43], %130 {strides = array<i32>} : memref<16x1xf32, #tpu.memory_space<vmem>>, vector<16x1xf32>,
    %132 = tpu.iota {dimensions = array<i32: 1>} : vector<1x128xi32>
    %c0_i32_44 = arith.constant 0 : i32
    %133 = vector.broadcast %c0_i32_44 : i32 to vector<1x128xi32>
    %134 = arith.cmpi eq, %132, %133 : vector<1x128xi32>
    %cst_45 = arith.constant 0.000000e+00 : f32
    %135 = vector.broadcast %81 : f32 to vector<1x128xf32>
    %136 = vector.broadcast %cst_45 : f32 to vector<1x128xf32>
    %137 = arith.select %134, %135, %136 : vector<1x128xi1>, vector<1x128xf32>
    %c1_i32_46 = arith.constant 1 : i32
    %138 = vector.broadcast %c1_i32_46 : i32 to vector<1x128xi32>
    %139 = arith.cmpi eq, %132, %138 : vector<1x128xi32>
    %140 = vector.broadcast %97 : f32 to vector<1x128xf32>
    %141 = arith.select %139, %140, %137 : vector<1x128xi1>, vector<1x128xf32>
    %c2_i32 = arith.constant 2 : i32
    %142 = vector.broadcast %c2_i32 : i32 to vector<1x128xi32>
    %143 = arith.cmpi eq, %132, %142 : vector<1x128xi32>
    %144 = vector.broadcast %129 : f32 to vector<1x128xf32>
    %145 = arith.select %143, %144, %141 : vector<1x128xi1>, vector<1x128xf32>
    %c0_i32_47 = arith.constant 0 : i32
    %146 = arith.cmpi eq, %arg1, %c0_i32_47 : i32
    %147 = arith.extui %146 : i1 to i32
    %c0_i32_48 = arith.constant 0 : i32
    %148 = arith.cmpi ne, %147, %c0_i32_48 : i32
    scf.if %148 {
      %cst_55 = arith.constant 0.000000e+00 : f32
      %155 = vector.broadcast %cst_55 : f32 to vector<1x128xf32>
      %c0_56 = arith.constant 0 : index
      %c0_57 = arith.constant 0 : index
      %c0_58 = arith.constant 0 : index
      %156 = vector.load %arg6[%c0_56, %c0_57, %c0_58] : memref<1x1x128xf32, #tpu.memory_space<vmem>>, vector<1x1x128xf32>
      %157 = vector.shape_cast %156 : vector<1x1x128xf32> to vector<1x128xf32>
      %158 = vector.shape_cast %155 : vector<1x128xf32> to vector<1x1x128xf32>
      tpu.vector_store %arg6[%c0_56, %c0_57, %c0_58], %158 {strides = array<i32>} : memref<1x1x128xf32, #tpu.memory_space<vmem>>, vector<1x1x128xf32>,
    } else {
    }
    %c0_49 = arith.constant 0 : index
    %c0_50 = arith.constant 0 : index
    %c0_51 = arith.constant 0 : index
    %149 = vector.load %arg6[%c0_49, %c0_50, %c0_51] : memref<1x1x128xf32, #tpu.memory_space<vmem>>, vector<1x1x128xf32>
    %150 = vector.shape_cast %149 : vector<1x1x128xf32> to vector<1x128xf32>
    %151 = arith.addf %150, %145 : vector<1x128xf32>
    %c0_52 = arith.constant 0 : index
    %c0_53 = arith.constant 0 : index
    %c0_54 = arith.constant 0 : index
    %152 = vector.load %arg6[%c0_52, %c0_53, %c0_54] : memref<1x1x128xf32, #tpu.memory_space<vmem>>, vector<1x1x128xf32>
    %153 = vector.shape_cast %152 : vector<1x1x128xf32> to vector<1x128xf32>
    %154 = vector.shape_cast %151 : vector<1x128xf32> to vector<1x1x128xf32>
    tpu.vector_store %arg6[%c0_52, %c0_53, %c0_54], %154 {strides = array<i32>} : memref<1x1x128xf32, #tpu.memory_space<vmem>>, vector<1x1x128xf32>,
    return
  }
  func.func @transform_0(%arg0: i32, %arg1: i32) -> (i32, i32, i32) {
    %c0_i32 = arith.constant 0 : i32
    %c0_i32_0 = arith.constant 0 : i32
    return %arg0, %c0_i32, %arg1 : i32, i32, i32
  }
  func.func @transform_1(%arg0: i32, %arg1: i32) -> (i32, i32, i32) {
    %c0_i32 = arith.constant 0 : i32
    %c0_i32_0 = arith.constant 0 : i32
    return %arg0, %c0_i32, %arg1 : i32, i32, i32
  }
  func.func @transform_2(%arg0: i32, %arg1: i32) -> (i32, i32, i32) {
    %c0_i32 = arith.constant 0 : i32
    %c0_i32_0 = arith.constant 0 : i32
    return %arg0, %c0_i32, %arg1 : i32, i32, i32
  }
  func.func @transform_3(%arg0: i32, %arg1: i32) -> (i32, i32, i32) {
    %c0_i32 = arith.constant 0 : i32
    %c0_i32_0 = arith.constant 0 : i32
    return %arg0, %c0_i32, %arg1 : i32, i32, i32
  }
  func.func @transform_4(%arg0: i32, %arg1: i32) -> (i32, i32, i32) {
    %c0_i32 = arith.constant 0 : i32
    %c0_i32_0 = arith.constant 0 : i32
    %c0_i32_1 = arith.constant 0 : i32
    return %arg0, %c0_i32, %c0_i32_0 : i32, i32, i32
  }
}

</mosaic_0001>

<llo_original>
// kernel: custom-call
$region0: #{custom-call}
  %s0 = inlined_call_operand.hbm [shape: c64[2,16,320], index: 0, kind: input, shape index: {}]
  %s1 = inlined_call_operand.vmem [shape: f32[2,16,320], index: 1, kind: output, shape index: {}]
  $region1: #{custom-call} parent=0
    #allocation0 [shape = 's32[1]{0}', space=sflag, size = 0x4, scoped, tag = 'scoped memory for custom-call']
    %2 = vsyncpa [#allocation0], 0
    %s4 = sshll.u32 %s0, 4
    %s5 = int_to_ptr.hbm [resolvable:$true] %s4
    %s6 = sshll.u32 %s1, 4
    %s7 = int_to_ptr.vmem [resolvable:$true] %s6
    %9 = dma.hbm_to_vmem [thread:$0]  %s5, 1536, %s7, [#allocation0]
    %11 = dma.done [#allocation0], 1536
    %12 = vsyncpa [#allocation0], 1

// kernel: custom-call.1
$region0: #{custom-call.1}
  %s0 = inlined_call_operand.hbm [shape: c64[2,16,320], index: 0, kind: input, shape index: {}]
  %s1 = inlined_call_operand.vmem [shape: f32[2,16,320], index: 1, kind: output, shape index: {}]
  %s2 = scalar_lea.hbm %s0, 96
  $region1: #{custom-call.1} parent=0
    #allocation0 [shape = 's32[1]{0}', space=sflag, size = 0x4, scoped, tag = 'scoped memory for custom-call.1']
    %3 = vsyncpa [#allocation0], 0
    %s5 = sshll.u32 %s2, 4
    %s6 = int_to_ptr.hbm [resolvable:$true] %s5
    %s7 = sshll.u32 %s1, 4
    %s8 = int_to_ptr.vmem [resolvable:$true] %s7
    %10 = dma.hbm_to_vmem [thread:$0]  %s6, 1536, %s8, [#allocation0]
    %12 = dma.done [#allocation0], 1536
    %13 = vsyncpa [#allocation0], 1

// kernel: wrapped_phase_loss.1
$region0: #{wrapped_phase_loss.1}
  #allocation0 [shape = 'u32[]', space=smem, size = 0x4, offset = 0x4, fixed_abs, tag = 'smem constant byte address 0x4 - core index']
  #allocation1 [shape = 'u32[72,128]{1,0:T(1,128)}', space=vmem, size = 0x9000, scoped, tag = 'internal scratch']
  #allocation2 [shape = 'f32[16,1]{1,0:T(8,128)}', space=vmem, size = 0x2000, scoped, tag = 'scratch operand']
  %s0 = inlined_call_operand.vmem [shape: f32[2,16,320], index: 0, kind: input, shape index: {}]
  %s1 = inlined_call_operand.vmem [shape: f32[2,16,320], index: 1, kind: input, shape index: {}]
  %s2 = inlined_call_operand.vmem [shape: f32[2,16,320], index: 2, kind: input, shape index: {}]
  %s3 = inlined_call_operand.vmem [shape: f32[2,16,320], index: 3, kind: input, shape index: {}]
  %s4 = inlined_call_operand.vmem [shape: f32[2,1,128], index: 4, kind: output, shape index: {}]
  %s5 = sld [smem:[#allocation0]]
  $region57: #{wrapped_phase_loss.1} parent=0
    _
  %s7 = ssub.s32 1, %s5
  %s8 = scalar_select 0, %s7, %s5
  loop: start=0, step=1, limit=4
  $region2: #{wrapped_phase_loss.1} parent=0 // loop_pre_header
    _
  $region3: #{wrapped_phase_loss.1} parent=0 // loop_header
    %s10 = sphi 0, %s14
    %p11 = scmp.ge.s32.totalorder %s10, 4
    %s17 = sphi 0, %s29
    %s18 = sphi 0, %s25
    %s19 = sphi 0, %s17
    %s20 = sphi 0, %s18
    %s21 = sphi 0, %s19
    %s22 = sphi 0, %s20
    %s34 = sphi 0, %s36
    %s37 = sphi 0, %s34
    %s38 = sphi 0, %s37
    %s54 = sphi 0, %s38
    %s62 = sphi 0, %s64
    %s65 = sphi 0, %s62
    %s66 = sphi 0, %s65
    %s82 = sphi 0, %s66
    %s90 = sphi 0, %s92
    %s93 = sphi 0, %s90
    %s94 = sphi 0, %s93
    %s110 = sphi 0, %s94
    %s118 = sphi 0, %s120
    %s121 = sphi 0, %s118
    %s122 = sphi 0, %s121
    %s138 = sphi 0, %s122
    %s144 = sphi 0, %s146
    %s147 = sphi 0, %s144
    %s148 = sphi 0, %s147
    %s164 = sphi 0, %s148
  $region4: #{wrapped_phase_loss.1} parent=0 // loop_header_branch
    %13 = sbr.rel (%p11) target = $region8
  $region5: #{wrapped_phase_loss.1} parent=0 // loop_body
    %s15 = ssub.s32 %s10, 1
    %s16 = ssub.s32 %s10, 2
    %s23 = sadd.s32 1, %s18
    %p24 = scmp.ge.s32.totalorder %s23, 1
    %s25 = scalar_select %p24, 0, %s23
    %s26 = sadd.s32 1, %s17
    %s27 = scalar_select %p24, %s26, %s17
    %p28 = scmp.ge.s32.totalorder %s27, 2
    %s29 = scalar_select %p28, 0, %s27
    %s30 = ssub.s32 %s17, %s29
    %s31 = ssub.s32 %s18, %s25
    %s32 = sor.u32 %s30, %s31
    %p33 = scmp.eq.s32.totalorder %s32, 0
    %s35 = sadd.s32 %s34, 1
    %s36 = scalar_select %p33, %s34, %s35
    %p39 = pneg %p33
    %p40 = scmp.eq.s32.totalorder %s10, 1
    %p41 = por %p39, %p40
    %p42 = scmp.ne.s32.totalorder %s34, %s37
    %p43 = scmp.eq.s32.totalorder %s10, 0
    %p44 = por %p42, %p43
    %p45 = scmp.ne.s32.totalorder %s34, %s37
    %p46 = scmp.eq.s32.totalorder %s15, 1
    %p47 = por %p45, %p46
    %p48 = scmp.ne.s32.totalorder %s37, %s38
    %p49 = scmp.eq.s32.totalorder %s15, 0
    %p50 = por %p48, %p49
    %p51 = scmp.ne.s32.totalorder %s37, %s38
    %p52 = scmp.eq.s32.totalorder %s16, 1
    %p53 = por %p51, %p52
    %p55 = scmp.ne.s32.totalorder %s38, %s54
    %p56 = scmp.eq.s32.totalorder %s16, 0
    %p57 = por %p55, %p56
    %s58 = ssub.s32 %s17, %s29
    %s59 = ssub.s32 %s18, %s25
    %s60 = sor.u32 %s58, %s59
    %p61 = scmp.eq.s32.totalorder %s60, 0
    %s63 = sadd.s32 %s62, 1
    %s64 = scalar_select %p61, %s62, %s63
    %p67 = pneg %p61
    %p68 = scmp.eq.s32.totalorder %s10, 1
    %p69 = por %p67, %p68
    %p70 = scmp.ne.s32.totalorder %s62, %s65
    %p71 = scmp.eq.s32.totalorder %s10, 0
    %p72 = por %p70, %p71
    %p73 = scmp.ne.s32.totalorder %s62, %s65
    %p74 = scmp.eq.s32.totalorder %s15, 1
    %p75 = por %p73, %p74
    %p76 = scmp.ne.s32.totalorder %s65, %s66
    %p77 = scmp.eq.s32.totalorder %s15, 0
    %p78 = por %p76, %p77
    %p79 = scmp.ne.s32.totalorder %s65, %s66
    %p80 = scmp.eq.s32.totalorder %s16, 1
    %p81 = por %p79, %p80
    %p83 = scmp.ne.s32.totalorder %s66, %s82
    %p84 = scmp.eq.s32.totalorder %s16, 0
    %p85 = por %p83, %p84
    %s86 = ssub.s32 %s17, %s29
    %s87 = ssub.s32 %s18, %s25
    %s88 = sor.u32 %s86, %s87
    %p89 = scmp.eq.s32.totalorder %s88, 0
    %s91 = sadd.s32 %s90, 1
    %s92 = scalar_select %p89, %s90, %s91
    %p95 = pneg %p89
    %p96 = scmp.eq.s32.totalorder %s10, 1
    %p97 = por %p95, %p96
    %p98 = scmp.ne.s32.totalorder %s90, %s93
    %p99 = scmp.eq.s32.totalorder %s10, 0
    %p100 = por %p98, %p99
    %p101 = scmp.ne.s32.totalorder %s90, %s93
    %p102 = scmp.eq.s32.totalorder %s15, 1
    %p103 = por %p101, %p102
    %p104 = scmp.ne.s32.totalorder %s93, %s94
    %p105 = scmp.eq.s32.totalorder %s15, 0
    %p106 = por %p104, %p105
    %p107 = scmp.ne.s32.totalorder %s93, %s94
    %p108 = scmp.eq.s32.totalorder %s16, 1
    %p109 = por %p107, %p108
    %p111 = scmp.ne.s32.totalorder %s94, %s110
    %p112 = scmp.eq.s32.totalorder %s16, 0
    %p113 = por %p111, %p112
    %s114 = ssub.s32 %s17, %s29
    %s115 = ssub.s32 %s18, %s25
    %s116 = sor.u32 %s114, %s115
    %p117 = scmp.eq.s32.totalorder %s116, 0
    %s119 = sadd.s32 %s118, 1
    %s120 = scalar_select %p117, %s118, %s119
    %p123 = pneg %p117
    %p124 = scmp.eq.s32.totalorder %s10, 1
    %p125 = por %p123, %p124
    %p126 = scmp.ne.s32.totalorder %s118, %s121
    %p127 = scmp.eq.s32.totalorder %s10, 0
    %p128 = por %p126, %p127
    %p129 = scmp.ne.s32.totalorder %s118, %s121
    %p130 = scmp.eq.s32.totalorder %s15, 1
    %p131 = por %p129, %p130
    %p132 = scmp.ne.s32.totalorder %s121, %s122
    %p133 = scmp.eq.s32.totalorder %s15, 0
    %p134 = por %p132, %p133
    %p135 = scmp.ne.s32.totalorder %s121, %s122
    %p136 = scmp.eq.s32.totalorder %s16, 1
    %p137 = por %p135, %p136
    %p139 = scmp.ne.s32.totalorder %s122, %s138
    %p140 = scmp.eq.s32.totalorder %s16, 0
    %p141 = por %p139, %p140
    %s142 = ssub.s32 %s17, %s29
    %p143 = scmp.eq.s32.totalorder %s142, 0
    %s145 = sadd.s32 %s144, 1
    %s146 = scalar_select %p143, %s144, %s145
    %p149 = pneg %p143
    %p150 = scmp.eq.s32.totalorder %s10, 1
    %p151 = por %p149, %p150
    %p152 = scmp.ne.s32.totalorder %s144, %s147
    %p153 = scmp.eq.s32.totalorder %s10, 0
    %p154 = por %p152, %p153
    %p155 = scmp.ne.s32.totalorder %s144, %s147
    %p156 = scmp.eq.s32.totalorder %s15, 1
    %p157 = por %p155, %p156
    %p158 = scmp.ne.s32.totalorder %s147, %s148
    %p159 = scmp.eq.s32.totalorder %s15, 0
    %p160 = por %p158, %p159
    %p161 = scmp.ne.s32.totalorder %s147, %s148
    %p162 = scmp.eq.s32.totalorder %s16, 1
    %p163 = por %p161, %p162
    %p165 = scmp.ne.s32.totalorder %s148, %s164
    %p166 = scmp.eq.s32.totalorder %s16, 0
    %p167 = por %p165, %p166
    %p168 = scmp.le.s32.totalorder 1, %s10
    %p169 = scmp.lt.s32.totalorder %s10, 3
    %p170 = pnand %p168, %p169
    %p171 = pneg %p170
    // Predicated region
    $region9: #{wrapped_phase_loss.1} parent=5 // pred_check
      _
    $region10: #{wrapped_phase_loss.1} parent=5 // pred_check_branch
      %173 = sbr.rel (%p170) target = $region12
    $region11: #{wrapped_phase_loss.1} parent=5 // pred_region
      %s174 = ssub.s32 %s10, 1
    $region12: #{wrapped_phase_loss.1} parent=5 // pred_fallthru
      _
    %p175 = scmp.lt.s32.totalorder %s10, 2
    // Predicated region
    $region13: #{wrapped_phase_loss.1} parent=5 // pred_check
      %p176 = pneg %p175
    $region14: #{wrapped_phase_loss.1} parent=5 // pred_check_branch
      %178 = sbr.rel (%p176) target = $region16
    $region15: #{wrapped_phase_loss.1} parent=5 // pred_region
      // Predicated region
      $region17: #{wrapped_phase_loss.1} parent=15 // pred_check
        %p179 = pneg %p44
      $region18: #{wrapped_phase_loss.1} parent=15 // pred_check_branch
        %181 = sbr.rel (%p179) target = $region20
      $region19: #{wrapped_phase_loss.1} parent=15 // pred_region
        %s182 = smul.u32 3, %s18
        %p183 = scmp.lt.s32.totalorder %s17, 1
        %s184 = scalar_select %p183, %s17, 1
        %p185 = scmp.lt.s32.totalorder %s182, 2
        %s186 = scalar_select %p185, %s182, 2
        %s187 = smul.addr %s184, 6
        %s188 = sadd.s32 %s186, %s187
        %s189 = smul.addr %s188, 8
        %s190 = scalar_lea.vmem %s0, %s189
        %s191 = smul.u32 3, %s18
      $region20: #{wrapped_phase_loss.1} parent=15 // pred_fallthru
        _
      // Predicated region
      $region21: #{wrapped_phase_loss.1} parent=15 // pred_check
        %p192 = pneg %p72
      $region22: #{wrapped_phase_loss.1} parent=15 // pred_check_branch
        %194 = sbr.rel (%p192) target = $region24
      $region23: #{wrapped_phase_loss.1} parent=15 // pred_region
        %s195 = smul.u32 3, %s18
        %p196 = scmp.lt.s32.totalorder %s17, 1
        %s197 = scalar_select %p196, %s17, 1
        %p198 = scmp.lt.s32.totalorder %s195, 2
        %s199 = scalar_select %p198, %s195, 2
        %s200 = smul.addr %s197, 6
        %s201 = sadd.s32 %s199, %s200
        %s202 = smul.addr %s201, 8
        %s203 = scalar_lea.vmem %s1, %s202
        %s204 = smul.u32 3, %s18
      $region24: #{wrapped_phase_loss.1} parent=15 // pred_fallthru
        _
      // Predicated region
      $region25: #{wrapped_phase_loss.1} parent=15 // pred_check
        %p205 = pneg %p100
      $region26: #{wrapped_phase_loss.1} parent=15 // pred_check_branch
        %207 = sbr.rel (%p205) target = $region28
      $region27: #{wrapped_phase_loss.1} parent=15 // pred_region
        %s208 = smul.u32 3, %s18
        %p209 = scmp.lt.s32.totalorder %s17, 1
        %s210 = scalar_select %p209, %s17, 1
        %p211 = scmp.lt.s32.totalorder %s208, 2
        %s212 = scalar_select %p211, %s208, 2
        %s213 = smul.addr %s210, 6
        %s214 = sadd.s32 %s212, %s213
        %s215 = smul.addr %s214, 8
        %s216 = scalar_lea.vmem %s2, %s215
        %s217 = smul.u32 3, %s18
      $region28: #{wrapped_phase_loss.1} parent=15 // pred_fallthru
        _
      // Predicated region
      $region29: #{wrapped_phase_loss.1} parent=15 // pred_check
        %p218 = pneg %p128
      $region30: #{wrapped_phase_loss.1} parent=15 // pred_check_branch
        %220 = sbr.rel (%p218) target = $region32
      $region31: #{wrapped_phase_loss.1} parent=15 // pred_region
        %s221 = smul.u32 3, %s18
        %p222 = scmp.lt.s32.totalorder %s17, 1
        %s223 = scalar_select %p222, %s17, 1
        %p224 = scmp.lt.s32.totalorder %s221, 2
        %s225 = scalar_select %p224, %s221, 2
        %s226 = smul.addr %s223, 6
        %s227 = sadd.s32 %s225, %s226
        %s228 = smul.addr %s227, 8
        %s229 = scalar_lea.vmem %s3, %s228
        %s230 = smul.u32 3, %s18
      $region32: #{wrapped_phase_loss.1} parent=15 // pred_fallthru
        _
    $region16: #{wrapped_phase_loss.1} parent=5 // pred_fallthru
      _
    %p231 = scmp.le.s32.totalorder 1, %s10
    %p232 = scmp.lt.s32.totalorder %s10, 3
    %p233 = pnand %p231, %p232
    %p234 = pneg %p233
    // Predicated region
    $region33: #{wrapped_phase_loss.1} parent=5 // pred_check
      _
    $region34: #{wrapped_phase_loss.1} parent=5 // pred_check_branch
      %236 = sbr.rel (%p233) target = $region36
    $region35: #{wrapped_phase_loss.1} parent=5 // pred_region
      %s237 = ssub.s32 %s10, 1
      %s238 = smul.u32 3, %s20
      %p239 = scmp.lt.s32.totalorder %s19, 1
      %s240 = scalar_select %p239, %s19, 1
      %p241 = scmp.lt.s32.totalorder %s238, 2
      %s242 = scalar_select %p241, %s238, 2
      %s243 = smul.addr %s240, 6
      %s244 = sadd.s32 %s242, %s243
      %s245 = smul.addr %s244, 8
      %s246 = scalar_lea.vmem %s0, %s245
      %p247 = pneg %p50
      %p248 = pneg %p47
      %s249 = smul.u32 3, %s20
      %p250 = scmp.lt.s32.totalorder %s19, 1
      %s251 = scalar_select %p250, %s19, 1
      %p252 = scmp.lt.s32.totalorder %s249, 2
      %s253 = scalar_select %p252, %s249, 2
      %s254 = smul.addr %s251, 6
      %s255 = sadd.s32 %s253, %s254
      %s256 = smul.addr %s255, 8
      %s257 = scalar_lea.vmem %s1, %s256
      %p258 = pneg %p78
      %p259 = pneg %p75
      %s260 = smul.u32 3, %s20
      %p261 = scmp.lt.s32.totalorder %s19, 1
      %s262 = scalar_select %p261, %s19, 1
      %p263 = scmp.lt.s32.totalorder %s260, 2
      %s264 = scalar_select %p263, %s260, 2
      %s265 = smul.addr %s262, 6
      %s266 = sadd.s32 %s264, %s265
      %s267 = smul.addr %s266, 8
      %s268 = scalar_lea.vmem %s2, %s267
      %p269 = pneg %p106
      %p270 = pneg %p103
      %s271 = smul.u32 3, %s20
      %p272 = scmp.lt.s32.totalorder %s19, 1
      %s273 = scalar_select %p272, %s19, 1
      %p274 = scmp.lt.s32.totalorder %s271, 2
      %s275 = scalar_select %p274, %s271, 2
      %s276 = smul.addr %s273, 6
      %s277 = sadd.s32 %s275, %s276
      %s278 = smul.addr %s277, 8
      %s279 = scalar_lea.vmem %s3, %s278
      %p280 = pneg %p134
      %p281 = pneg %p131
      %p282 = pneg %p160
      %p283 = pneg %p157
      %p284 = scmp.lt.s32.totalorder %s19, 1
      %s285 = scalar_select %p284, %s19, 1
      %s286 = scalar_lea.vmem %s4, %s285
      %s287 = smul.u32 3, %s20
      %p288 = scmp.lt.s32.totalorder %s19, 1
      %s289 = scalar_select %p288, %s19, 1
      %p290 = scmp.lt.s32.totalorder %s287, 2
      %s291 = scalar_select %p290, %s287, 2
      %s292 = smul.addr %s289, 6
      %s293 = sadd.s32 %s291, %s292
      %s294 = smul.addr %s293, 8
      %s295 = scalar_lea.vmem %s0, %s294
      %s296 = smul.u32 3, %s20
      %s297 = smul.u32 3, %s20
      %p298 = scmp.lt.s32.totalorder %s19, 1
      %s299 = scalar_select %p298, %s19, 1
      %p300 = scmp.lt.s32.totalorder %s297, 2
      %s301 = scalar_select %p300, %s297, 2
      %s302 = smul.addr %s299, 6
      %s303 = sadd.s32 %s301, %s302
      %s304 = smul.addr %s303, 8
      %s305 = scalar_lea.vmem %s1, %s304
      %s306 = smul.u32 3, %s20
      %s307 = smul.u32 3, %s20
      %p308 = scmp.lt.s32.totalorder %s19, 1
      %s309 = scalar_select %p308, %s19, 1
      %p310 = scmp.lt.s32.totalorder %s307, 2
      %s311 = scalar_select %p310, %s307, 2
      %s312 = smul.addr %s309, 6
      %s313 = sadd.s32 %s311, %s312
      %s314 = smul.addr %s313, 8
      %s315 = scalar_lea.vmem %s2, %s314
      %s316 = smul.u32 3, %s20
      %s317 = smul.u32 3, %s20
      %p318 = scmp.lt.s32.totalorder %s19, 1
      %s319 = scalar_select %p318, %s19, 1
      %p320 = scmp.lt.s32.totalorder %s317, 2
      %s321 = scalar_select %p320, %s317, 2
      %s322 = smul.addr %s319, 6
      %s323 = sadd.s32 %s321, %s322
      %s324 = smul.addr %s323, 8
      %s325 = scalar_lea.vmem %s3, %s324
      %s326 = smul.u32 3, %s20
      %p327 = scmp.lt.s32.totalorder %s19, 1
      %s328 = scalar_select %p327, %s19, 1
      %s329 = scalar_lea.vmem %s4, %s328
      %v330 = vld [vmem:[%s295] sm:$0xff]
      %v331 = vld [vmem:[%s295 + $0x8] sm:$0xff]
      %v332 = vld [vmem:[%s295 + $0x10] sm:$0xff]
      %v333 = vld [vmem:[%s295 + $0x18] sm:$0xff]
      %v334 = vld [vmem:[%s295 + $0x20] sm:$0xff]
      %v335 = vld [vmem:[%s295 + $0x28] sm:$0xff]
      %v336 = vadd.f32 %v330, 1e-05
      %v337 = vadd.f32 %v331, 1e-05
      %v338 = vadd.f32 %v332, 1e-05
      %v339 = vadd.f32 %v333, 1e-05
      %v340 = vadd.f32 %v334, 1e-05
      %v341 = vadd.f32 %v335, 1e-05
      %v342 = vld [vmem:[%s305] sm:$0xff]
      %v343 = vld [vmem:[%s305 + $0x8] sm:$0xff]
      %v344 = vld [vmem:[%s305 + $0x10] sm:$0xff]
      %v345 = vld [vmem:[%s305 + $0x18] sm:$0xff]
      %v346 = vld [vmem:[%s305 + $0x20] sm:$0xff]
      %v347 = vld [vmem:[%s305 + $0x28] sm:$0xff]
      %v348 = vadd.f32 %v342, 1e-10
      %v349 = vadd.f32 %v343, 1e-10
      %v350 = vadd.f32 %v344, 1e-10
      %v351 = vadd.f32 %v345, 1e-10
      %v352 = vadd.f32 %v346, 1e-10
      %v353 = vadd.f32 %v347, 1e-10
      %v354 = vld [vmem:[%s315] sm:$0xff]
      %v355 = vld [vmem:[%s315 + $0x8] sm:$0xff]
      %v356 = vld [vmem:[%s315 + $0x10] sm:$0xff]
      %v357 = vld [vmem:[%s315 + $0x18] sm:$0xff]
      %v358 = vld [vmem:[%s315 + $0x20] sm:$0xff]
      %v359 = vld [vmem:[%s315 + $0x28] sm:$0xff]
      %v360 = vadd.f32 %v354, 1e-05
      %v361 = vadd.f32 %v355, 1e-05
      %v362 = vadd.f32 %v356, 1e-05
      %v363 = vadd.f32 %v357, 1e-05
      %v364 = vadd.f32 %v358, 1e-05
      %v365 = vadd.f32 %v359, 1e-05
      %v366 = vld [vmem:[%s325] sm:$0xff]
      %v367 = vld [vmem:[%s325 + $0x8] sm:$0xff]
      %v368 = vld [vmem:[%s325 + $0x10] sm:$0xff]
      %v369 = vld [vmem:[%s325 + $0x18] sm:$0xff]
      %v370 = vld [vmem:[%s325 + $0x20] sm:$0xff]
      %v371 = vld [vmem:[%s325 + $0x28] sm:$0xff]
      %v372 = vadd.f32 %v366, 1e-10
      %v373 = vadd.f32 %v367, 1e-10
      %v374 = vadd.f32 %v368, 1e-10
      %v375 = vadd.f32 %v369, 1e-10
      %v376 = vadd.f32 %v370, 1e-10
      %v377 = vadd.f32 %v371, 1e-10
      %v378 = vmul.f32 %v348, %v360
      %v379 = vmul.f32 %v349, %v361
      %v380 = vmul.f32 %v350, %v362
      %v381 = vmul.f32 %v351, %v363
      %v382 = vmul.f32 %v352, %v364
      %v383 = vmul.f32 %v353, %v365
      %v384 = vmul.f32 %v336, %v372
      %v385 = vmul.f32 %v337, %v373
      %v386 = vmul.f32 %v338, %v374
      %v387 = vmul.f32 %v339, %v375
      %v388 = vmul.f32 %v340, %v376
      %v389 = vmul.f32 %v341, %v377
      %v390 = vsub.f32 %v378, %v384
      %v391 = vsub.f32 %v379, %v385
      %v392 = vsub.f32 %v380, %v386
      %v393 = vsub.f32 %v381, %v387
      %v394 = vsub.f32 %v382, %v388
      %v395 = vsub.f32 %v383, %v389
      %v396 = vmul.f32 %v336, %v360
      %v397 = vmul.f32 %v337, %v361
      %v398 = vmul.f32 %v338, %v362
      %v399 = vmul.f32 %v339, %v363
      %v400 = vmul.f32 %v340, %v364
      %v401 = vmul.f32 %v341, %v365
      %v402 = vmul.f32 %v348, %v372
      %v403 = vmul.f32 %v349, %v373
      %v404 = vmul.f32 %v350, %v374
      %v405 = vmul.f32 %v351, %v375
      %v406 = vmul.f32 %v352, %v376
      %v407 = vmul.f32 %v353, %v377
      %v408 = vadd.f32 %v396, %v402
      %v409 = vadd.f32 %v397, %v403
      %v410 = vadd.f32 %v398, %v404
      %v411 = vadd.f32 %v399, %v405
      %v412 = vadd.f32 %v400, %v406
      %v413 = vadd.f32 %v401, %v407
      %v414 = vand.u32 2147483647, %v408
      %v415 = vand.u32 2147483647, %v409
      %v416 = vand.u32 2147483647, %v410
      %v417 = vand.u32 2147483647, %v411
      %v418 = vand.u32 2147483647, %v412
      %v419 = vand.u32 2147483647, %v413
      %v420 = vand.u32 2147483647, %v390
      %v421 = vand.u32 2147483647, %v391
      %v422 = vand.u32 2147483647, %v392
      %v423 = vand.u32 2147483647, %v393
      %v424 = vand.u32 2147483647, %v394
      %v425 = vand.u32 2147483647, %v395
      %v426 = vmax.f32 %v414, %v420
      %v427 = vmax.f32 %v415, %v421
      %v428 = vmax.f32 %v416, %v422
      %v429 = vmax.f32 %v417, %v423
      %v430 = vmax.f32 %v418, %v424
      %v431 = vmax.f32 %v419, %v425
      %v432 = vmin.f32 %v414, %v420
      %v433 = vmin.f32 %v415, %v421
      %v434 = vmin.f32 %v416, %v422
      %v435 = vmin.f32 %v417, %v423
      %v436 = vmin.f32 %v418, %v424
      %v437 = vmin.f32 %v419, %v425
      %v438 = vmax.f32 %v426, 1e-30
      %v439 = vmax.f32 %v427, 1e-30
      %v440 = vmax.f32 %v428, 1e-30
      %v441 = vmax.f32 %v429, 1e-30
      %v442 = vmax.f32 %v430, 1e-30
      %v443 = vmax.f32 %v431, 1e-30
      %v444 = vrcp.pop %v438
      %v445 = vrcp.pop %v439
      %v446 = vrcp.pop %v440
      %v447 = vrcp.pop %v441
      %v448 = vrcp.pop %v442
      %v449 = vrcp.pop %v443
      %v450 = vmul.f32 %v438, %v444
      %v451 = vmul.f32 %v439, %v445
      %v452 = vmul.f32 %v440, %v446
      %v453 = vmul.f32 %v441, %v447
      %v454 = vmul.f32 %v442, %v448
      %v455 = vmul.f32 %v443, %v449
      %v456 = vsub.f32 2.0, %v450
      %v457 = vsub.f32 2.0, %v451
      %v458 = vsub.f32 2.0, %v452
      %v459 = vsub.f32 2.0, %v453
      %v460 = vsub.f32 2.0, %v454
      %v461 = vsub.f32 2.0, %v455
      %v462 = vmul.f32 %v444, %v456
      %v463 = vmul.f32 %v445, %v457
      %v464 = vmul.f32 %v446, %v458
      %v465 = vmul.f32 %v447, %v459
      %v466 = vmul.f32 %v448, %v460
      %v467 = vmul.f32 %v449, %v461
      %v468 = vmul.f32 %v432, %v462
      %v469 = vmul.f32 %v433, %v463
      %v470 = vmul.f32 %v434, %v464
      %v471 = vmul.f32 %v435, %v465
      %v472 = vmul.f32 %v436, %v466
      %v473 = vmul.f32 %v437, %v467
      %v474 = vmul.f32 %v468, %v468
      %v475 = vmul.f32 %v469, %v469
      %v476 = vmul.f32 %v470, %v470
      %v477 = vmul.f32 %v471, %v471
      %v478 = vmul.f32 %v472, %v472
      %v479 = vmul.f32 %v473, %v473
      %v480 = vmul.f32 %v474, -0.0117212
      %v481 = vmul.f32 %v475, -0.0117212
      %v482 = vmul.f32 %v476, -0.0117212
      %v483 = vmul.f32 %v477, -0.0117212
      %v484 = vmul.f32 %v478, -0.0117212
      %v485 = vmul.f32 %v479, -0.0117212
      %v486 = vadd.f32 %v480, 0.05265332
      %v487 = vadd.f32 %v481, 0.05265332
      %v488 = vadd.f32 %v482, 0.05265332
      %v489 = vadd.f32 %v483, 0.05265332
      %v490 = vadd.f32 %v484, 0.05265332
      %v491 = vadd.f32 %v485, 0.05265332
      %v492 = vmul.f32 %v486, %v474
      %v493 = vmul.f32 %v487, %v475
      %v494 = vmul.f32 %v488, %v476
      %v495 = vmul.f32 %v489, %v477
      %v496 = vmul.f32 %v490, %v478
      %v497 = vmul.f32 %v491, %v479
      %v498 = vadd.f32 %v492, -0.11643287
      %v499 = vadd.f32 %v493, -0.11643287
      %v500 = vadd.f32 %v494, -0.11643287
      %v501 = vadd.f32 %v495, -0.11643287
      %v502 = vadd.f32 %v496, -0.11643287
      %v503 = vadd.f32 %v497, -0.11643287
      %v504 = vmul.f32 %v498, %v474
      %v505 = vmul.f32 %v499, %v475
      %v506 = vmul.f32 %v500, %v476
      %v507 = vmul.f32 %v501, %v477
      %v508 = vmul.f32 %v502, %v478
      %v509 = vmul.f32 %v503, %v479
      %v510 = vadd.f32 %v504, 0.19354346
      %v511 = vadd.f32 %v505, 0.19354346
      %v512 = vadd.f32 %v506, 0.19354346
      %v513 = vadd.f32 %v507, 0.19354346
      %v514 = vadd.f32 %v508, 0.19354346
      %v515 = vadd.f32 %v509, 0.19354346
      %v516 = vmul.f32 %v510, %v474
      %v517 = vmul.f32 %v511, %v475
      %v518 = vmul.f32 %v512, %v476
      %v519 = vmul.f32 %v513, %v477
      %v520 = vmul.f32 %v514, %v478
      %v521 = vmul.f32 %v515, %v479
      %v522 = vadd.f32 %v516, -0.33262348
      %v523 = vadd.f32 %v517, -0.33262348
      %v524 = vadd.f32 %v518, -0.33262348
      %v525 = vadd.f32 %v519, -0.33262348
      %v526 = vadd.f32 %v520, -0.33262348
      %v527 = vadd.f32 %v521, -0.33262348
      %v528 = vmul.f32 %v522, %v474
      %v529 = vmul.f32 %v523, %v475
      %v530 = vmul.f32 %v524, %v476
      %v531 = vmul.f32 %v525, %v477
      %v532 = vmul.f32 %v526, %v478
      %v533 = vmul.f32 %v527, %v479
      %v534 = vadd.f32 %v528, 0.99997723
      %v535 = vadd.f32 %v529, 0.99997723
      %v536 = vadd.f32 %v530, 0.99997723
      %v537 = vadd.f32 %v531, 0.99997723
      %v538 = vadd.f32 %v532, 0.99997723
      %v539 = vadd.f32 %v533, 0.99997723
      %v540 = vmul.f32 %v534, %v468
      %v541 = vmul.f32 %v535, %v469
      %v542 = vmul.f32 %v536, %v470
      %v543 = vmul.f32 %v537, %v471
      %v544 = vmul.f32 %v538, %v472
      %v545 = vmul.f32 %v539, %v473
      %vm546 = vcmp.gt.f32.partialorder %v420, %v414
      %vm547 = vcmp.gt.f32.partialorder %v421, %v415
      %vm548 = vcmp.gt.f32.partialorder %v422, %v416
      %vm549 = vcmp.gt.f32.partialorder %v423, %v417
      %vm550 = vcmp.gt.f32.partialorder %v424, %v418
      %vm551 = vcmp.gt.f32.partialorder %v425, %v419
      %v552 = vsub.f32 1.5707964, %v540
      %v553 = vsub.f32 1.5707964, %v541
      %v554 = vsub.f32 1.5707964, %v542
      %v555 = vsub.f32 1.5707964, %v543
      %v556 = vsub.f32 1.5707964, %v544
      %v557 = vsub.f32 1.5707964, %v545
      %v558 = vsel %vm546, %v552, %v540
      %v559 = vsel %vm547, %v553, %v541
      %v560 = vsel %vm548, %v554, %v542
      %v561 = vsel %vm549, %v555, %v543
      %v562 = vsel %vm550, %v556, %v544
      %v563 = vsel %vm551, %v557, %v545
      %vm564 = vcmp.lt.f32.partialorder %v408, 0.0
      %vm565 = vcmp.lt.f32.partialorder %v409, 0.0
      %vm566 = vcmp.lt.f32.partialorder %v410, 0.0
      %vm567 = vcmp.lt.f32.partialorder %v411, 0.0
      %vm568 = vcmp.lt.f32.partialorder %v412, 0.0
      %vm569 = vcmp.lt.f32.partialorder %v413, 0.0
      %v570 = vsub.f32 3.1415927, %v558
      %v571 = vsub.f32 3.1415927, %v559
      %v572 = vsub.f32 3.1415927, %v560
      %v573 = vsub.f32 3.1415927, %v561
      %v574 = vsub.f32 3.1415927, %v562
      %v575 = vsub.f32 3.1415927, %v563
      %v576 = vsel %vm564, %v570, %v558
      %v577 = vsel %vm565, %v571, %v559
      %v578 = vsel %vm566, %v572, %v560
      %v579 = vsel %vm567, %v573, %v561
      %v580 = vsel %vm568, %v574, %v562
      %v581 = vsel %vm569, %v575, %v563
      %vm582 = vcmp.lt.f32.partialorder %v390, 0.0
      %vm583 = vcmp.lt.f32.partialorder %v391, 0.0
      %vm584 = vcmp.lt.f32.partialorder %v392, 0.0
      %vm585 = vcmp.lt.f32.partialorder %v393, 0.0
      %vm586 = vcmp.lt.f32.partialorder %v394, 0.0
      %vm587 = vcmp.lt.f32.partialorder %v395, 0.0
      %v588 = vsub.f32 0.0, %v576
      %v589 = vsub.f32 0.0, %v577
      %v590 = vsub.f32 0.0, %v578
      %v591 = vsub.f32 0.0, %v579
      %v592 = vsub.f32 0.0, %v580
      %v593 = vsub.f32 0.0, %v581
      %v594 = vsel %vm582, %v588, %v576
      %v595 = vsel %vm583, %v589, %v577
      %v596 = vsel %vm584, %v590, %v578
      %v597 = vsel %vm585, %v591, %v579
      %v598 = vsel %vm586, %v592, %v580
      %v599 = vsel %vm587, %v593, %v581
      %v600 = vlaneseq
      %v601 = vand.u32 %v600, 127
      %v602 = vadd.s32 %v601, 128
      %v603 = vadd.s32 %v601, 256
      %v604 = vlaneseq
      %v605 = vshrl.u32 %v604, 7
      %v606 = vadd.s32 %v605, 8
      %s607 = smul.u32 %s20, 384
      %s608 = ssub.s32 320, %s607
      %p609 = scmp.lt.s32.totalorder %s608, 384
      %s610 = scalar_select %p609, %s608, 384
      %v611 = vstv %s610
      %vm612 = vcmp.lt.s32.totalorder %v601, %v611
      %vm613 = vcmp.lt.s32.totalorder %v602, %v611
      %vm614 = vcmp.lt.s32.totalorder %v603, %v611
      %v615 = vsel %vm612, 1, 0
      %v616 = vsel %vm613, 1, 0
      %v617 = vsel %vm614, 1, 0
      %vm618 = vcmp.eq.s32.totalorder %v615, 1
      %vm619 = vcmp.eq.s32.totalorder %v616, 1
      %vm620 = vcmp.eq.s32.totalorder %v617, 1
      %v621 = vsel %vm618, %v594, 0.0
      %v622 = vsel %vm619, %v595, 0.0
      %v623 = vsel %vm620, %v596, 0.0
      %v624 = vsel %vm618, %v597, 0.0
      %v625 = vsel %vm619, %v598, 0.0
      %v626 = vsel %vm620, %v599, 0.0
      %v627 = vand.u32 2147483647, %v621
      %v628 = vand.u32 2147483647, %v622
      %v629 = vand.u32 2147483647, %v623
      %v630 = vand.u32 2147483647, %v624
      %v631 = vand.u32 2147483647, %v625
      %v632 = vand.u32 2147483647, %v626
      %v633 = vadd.f32 %v627, %v628
      %v634 = vadd.f32 %v633, %v629
      %v635 = vadd.f32 %v634, %v630
      %v636 = vadd.f32 %v635, %v631
      %v637 = vadd.f32 %v636, %v632
      %638 = vadd.xlane.f32.xlu0 %v637
      %v639 = vpop.xlane.xlu0 %638
      %v640 = vrot.slane %v639, 4
      %v641 = vadd.f32 %v639, %v640
      %v642 = vrot.slane %v641, 2
      %v643 = vadd.f32 %v641, %v642
      %v644 = vrot.slane %v643, 1
      %v645 = vadd.f32 %v643, %v644
      %s646 = vtos %v645
      %v647 = vrot.slane %v621, 1
      %v648 = vrot.slane %v622, 1
      %v649 = vrot.slane %v623, 1
      %v650 = vrot.slane %v624, 1
      %v651 = vrot.slane %v625, 1
      %v652 = vrot.slane %v626, 1
      %vm653 = vcmp.lt.s32.totalorder %v605, 7
      %v654 = vsel %vm653, %v647, %v650
      %v655 = vsel %vm653, %v648, %v651
      %v656 = vsel %vm653, %v649, %v652
      %v657 = vsel %vm653, %v650, %v647
      %v658 = vsel %vm653, %v651, %v648
      %v659 = vsel %vm653, %v652, %v649
      %v660 = vsub.f32 %v654, %v621
      %v661 = vsub.f32 %v655, %v622
      %v662 = vsub.f32 %v656, %v623
      %v663 = vsub.f32 %v657, %v624
      %v664 = vsub.f32 %v658, %v625
      %v665 = vsub.f32 %v659, %v626
      %v666 = vand.u32 2147483647, %v660
      %v667 = vand.u32 2147483647, %v661
      %v668 = vand.u32 2147483647, %v662
      %v669 = vand.u32 2147483647, %v663
      %v670 = vand.u32 2147483647, %v664
      %v671 = vand.u32 2147483647, %v665
      %v672 = vsub.f32 6.2831855, %v666
      %v673 = vsub.f32 6.2831855, %v667
      %v674 = vsub.f32 6.2831855, %v668
      %v675 = vsub.f32 6.2831855, %v669
      %v676 = vsub.f32 6.2831855, %v670
      %v677 = vsub.f32 6.2831855, %v671
      %v678 = vmin.f32 %v666, %v672
      %v679 = vmin.f32 %v667, %v673
      %v680 = vmin.f32 %v668, %v674
      %v681 = vmin.f32 %v669, %v675
      %v682 = vmin.f32 %v670, %v676
      %v683 = vmin.f32 %v671, %v677
      %vm684 = vcmp.lt.s32.totalorder %v605, 15
      %vm685 = vcmp.lt.s32.totalorder %v606, 15
      %v686 = vsel %vm684, 1, 0
      %v687 = vsel %vm685, 1, 0
      %vm688 = vcmp.eq.s32.totalorder %v686, 1
      %vm689 = vcmp.eq.s32.totalorder %v687, 1
      %v690 = vsel %vm688, %v678, 0.0
      %v691 = vsel %vm688, %v679, 0.0
      %v692 = vsel %vm688, %v680, 0.0
      %v693 = vsel %vm689, %v681, 0.0
      %v694 = vsel %vm689, %v682, 0.0
      %v695 = vsel %vm689, %v683, 0.0
      %v696 = vadd.f32 %v690, %v691
      %v697 = vadd.f32 %v696, %v692
      %v698 = vadd.f32 %v697, %v693
      %v699 = vadd.f32 %v698, %v694
      %v700 = vadd.f32 %v699, %v695
      %701 = vadd.xlane.f32.xlu0 %v700
      %v702 = vpop.xlane.xlu0 %701
      %v703 = vrot.slane %v702, 4
      %v704 = vadd.f32 %v702, %v703
      %v705 = vrot.slane %v704, 2
      %v706 = vadd.f32 %v704, %v705
      %v707 = vrot.slane %v706, 1
      %v708 = vadd.f32 %v706, %v707
      %s709 = vtos %v708
      %710 = vrot.lane.b32.xlu0 %v621, 127
      %v711 = vpop.permute.xlu0 %710
      %712 = vrot.lane.b32.xlu0 %v624, 127
      %v713 = vpop.permute.xlu0 %712
      %714 = vrot.lane.b32.xlu0 %v622, 127
      %v715 = vpop.permute.xlu0 %714
      %716 = vrot.lane.b32.xlu0 %v625, 127
      %v717 = vpop.permute.xlu0 %716
      %718 = vrot.lane.b32.xlu0 %v623, 127
      %v719 = vpop.permute.xlu0 %718
      %720 = vrot.lane.b32.xlu0 %v626, 127
      %v721 = vpop.permute.xlu0 %720
      %vm722 = vcmp.lt.s32.totalorder %v601, 127
      %v723 = vsel %vm722, %v715, %v719
      %v724 = vsel %vm722, %v717, %v721
      %v725 = vsel %vm722, %v711, %v715
      %v726 = vsel %vm722, %v713, %v717
      %v727 = vsel %vm722, %v719, %v711
      %v728 = vsel %vm722, %v721, %v713
      %v729 = vsub.f32 %v725, %v621
      %v730 = vsub.f32 %v723, %v622
      %v731 = vsub.f32 %v727, %v623
      %v732 = vsub.f32 %v726, %v624
      %v733 = vsub.f32 %v724, %v625
      %v734 = vsub.f32 %v728, %v626
      %v735 = vand.u32 2147483647, %v729
      %v736 = vand.u32 2147483647, %v730
      %v737 = vand.u32 2147483647, %v731
      %v738 = vand.u32 2147483647, %v732
      %v739 = vand.u32 2147483647, %v733
      %v740 = vand.u32 2147483647, %v734
      %v741 = vsub.f32 6.2831855, %v735
      %v742 = vsub.f32 6.2831855, %v736
      %v743 = vsub.f32 6.2831855, %v737
      %v744 = vsub.f32 6.2831855, %v738
      %v745 = vsub.f32 6.2831855, %v739
      %v746 = vsub.f32 6.2831855, %v740
      %v747 = vmin.f32 %v735, %v741
      %v748 = vmin.f32 %v736, %v742
      %v749 = vmin.f32 %v737, %v743
      %v750 = vmin.f32 %v738, %v744
      %v751 = vmin.f32 %v739, %v745
      %v752 = vmin.f32 %v740, %v746
      %s753 = ssub.s32 %s610, 1
      %v754 = vstv %s753
      %vm755 = vcmp.lt.s32.totalorder %v601, %v754
      %vm756 = vcmp.lt.s32.totalorder %v602, %v754
      %vm757 = vcmp.lt.s32.totalorder %v603, %v754
      %v758 = vsel %vm755, 1, 0
      %v759 = vsel %vm756, 1, 0
      %v760 = vsel %vm757, 1, 0
      %vm761 = vcmp.eq.s32.totalorder %v758, 1
      %vm762 = vcmp.eq.s32.totalorder %v759, 1
      %vm763 = vcmp.eq.s32.totalorder %v760, 1
      %v764 = vsel %vm761, %v747, 0.0
      %v765 = vsel %vm762, %v748, 0.0
      %v766 = vsel %vm763, %v749, 0.0
      %v767 = vsel %vm761, %v750, 0.0
      %v768 = vsel %vm762, %v751, 0.0
      %v769 = vsel %vm763, %v752, 0.0
      %v770 = vadd.f32 %v764, %v765
      %v771 = vadd.f32 %v770, %v766
      %v772 = vadd.f32 %v771, %v767
      %v773 = vadd.f32 %v772, %v768
      %v774 = vadd.f32 %v773, %v769
      %775 = vadd.xlane.f32.xlu0 %v774
      %v776 = vpop.xlane.xlu0 %775
      %v777 = vrot.slane %v776, 4
      %v778 = vadd.f32 %v776, %v777
      %v779 = vrot.slane %v778, 2
      %v780 = vadd.f32 %v778, %v779
      %v781 = vrot.slane %v780, 1
      %v782 = vadd.f32 %v780, %v781
      %s783 = vtos %v782
      %p784 = scmp.eq.s32.totalorder %s20, 0
      // Predicated region
      $region37: #{wrapped_phase_loss.1} parent=35 // pred_check
        %p785 = pneg %p784
      $region38: #{wrapped_phase_loss.1} parent=35 // pred_check_branch
        %787 = sbr.rel (%p785) target = $region40
      $region39: #{wrapped_phase_loss.1} parent=35 // pred_region
        %vm788 = vcmask 7168
        %789 = vst.msk [vmem:[#allocation2] sm:$0xff] %vm788, %v621
        %790 = vst.msk [vmem:[#allocation2 + $0x8] sm:$0xff] %vm788, %v624
      $region40: #{wrapped_phase_loss.1} parent=35 // pred_fallthru
        _
      %v791 = vld [vmem:[#allocation2] sm:$0xff]
      %v792 = vld [vmem:[#allocation2 + $0x8] sm:$0xff]
      %v793 = vsub.f32 %v621, %v791
      %v794 = vsub.f32 %v624, %v792
      %v795 = vand.u32 2147483647, %v793
      %v796 = vand.u32 2147483647, %v794
      %v797 = vsub.f32 6.2831855, %v795
      %v798 = vsub.f32 6.2831855, %v796
      %v799 = vmin.f32 %v795, %v797
      %v800 = vmin.f32 %v796, %v798
      %vm801 = vcmask 7168
      %v802 = vsel %vm801, %v799, 0.0
      %v803 = vsel %vm801, %v800, 0.0
      %v804 = vadd.f32 %v802, %v803
      %805 = vadd.xlane.f32.xlu0 %v804
      %v806 = vpop.xlane.xlu0 %805
      %v807 = vrot.slane %v806, 4
      %v808 = vadd.f32 %v806, %v807
      %v809 = vrot.slane %v808, 2
      %v810 = vadd.f32 %v808, %v809
      %v811 = vrot.slane %v810, 1
      %v812 = vadd.f32 %v810, %v811
      %s813 = vtos %v812
      %s814 = sadd.f32 %s783, %s813
      %817 = vrot.lane.b32.xlu0 %v623, 1
      %v818 = vpop.permute.xlu0 %817
      %819 = vrot.lane.b32.xlu0 %v626, 1
      %v820 = vpop.permute.xlu0 %819
      %823 = vst.msk [vmem:[#allocation2] sm:$0xff] %vm801, %v818
      %824 = vst.msk [vmem:[#allocation2 + $0x8] sm:$0xff] %vm801, %v820
      %vm825 = vcmp.eq.s32.totalorder %v601, 0
      %v826 = vstv %s646
      %v827 = vsel %vm825, %v826, 0.0
      %vm828 = vcmp.eq.s32.totalorder %v601, 1
      %v829 = vstv %s709
      %v830 = vsel %vm828, %v829, %v827
      %vm831 = vcmp.eq.s32.totalorder %v601, 2
      %v832 = vstv %s814
      %v833 = vsel %vm831, %v832, %v830
      // Predicated region
      $region41: #{wrapped_phase_loss.1} parent=35 // pred_check
        %p834 = pneg %p784
      $region42: #{wrapped_phase_loss.1} parent=35 // pred_check_branch
        %836 = sbr.rel (%p834) target = $region44
      $region43: #{wrapped_phase_loss.1} parent=35 // pred_region
        %837 = vst [vmem:[%s329] sm:$0x1] 0.0
      $region44: #{wrapped_phase_loss.1} parent=35 // pred_fallthru
        _
      %v838 = vld [vmem:[%s329] sm:$0x1]
      %v839 = vadd.f32 %v838, %v833
      %840 = vst [vmem:[%s329] sm:$0x1] %v839
      %p841 = scmp.lt.s32.totalorder %s19, 1
      %s842 = scalar_select %p841, %s19, 1
      %s843 = scalar_lea.vmem %s4, %s842
      // Predicated region
      $region45: #{wrapped_phase_loss.1} parent=35 // pred_check
        %p844 = pneg %p157
      $region46: #{wrapped_phase_loss.1} parent=35 // pred_check_branch
        %846 = sbr.rel (%p844) target = $region48
      $region47: #{wrapped_phase_loss.1} parent=35 // pred_region
        _
      $region48: #{wrapped_phase_loss.1} parent=35 // pred_fallthru
        _
    $region36: #{wrapped_phase_loss.1} parent=5 // pred_fallthru
      _
    %p847 = scmp.le.s32.totalorder 2, %s10
    // Predicated region
    $region49: #{wrapped_phase_loss.1} parent=5 // pred_check
      %p848 = pneg %p847
    $region50: #{wrapped_phase_loss.1} parent=5 // pred_check_branch
      %850 = sbr.rel (%p848) target = $region52
    $region51: #{wrapped_phase_loss.1} parent=5 // pred_region
      %s851 = ssub.s32 %s10, 2
      // Predicated region
      $region53: #{wrapped_phase_loss.1} parent=51 // pred_check
        %p852 = pneg %p163
      $region54: #{wrapped_phase_loss.1} parent=51 // pred_check_branch
        %854 = sbr.rel (%p852) target = $region56
      $region55: #{wrapped_phase_loss.1} parent=51 // pred_region
        %p855 = scmp.lt.s32.totalorder %s21, 1
        %s856 = scalar_select %p855, %s21, 1
        %s857 = scalar_lea.vmem %s4, %s856
      $region56: #{wrapped_phase_loss.1} parent=51 // pred_fallthru
        _
    $region52: #{wrapped_phase_loss.1} parent=5 // pred_fallthru
      _
  $region6: #{wrapped_phase_loss.1} parent=0 // loop_footer
    %s14 = sadd.s32 1, %s10
  $region7: #{wrapped_phase_loss.1} parent=0 // loop_footer_branch
    %9 = sbr.rel target = $region3
  $region8: #{wrapped_phase_loss.1} parent=0 // loop_exit
    _

</llo_original>
